<compile_context>
chip_gen: v7x
topology: tpu7x:2x2x1
jax: 0.10.0
libtpu: 0.0.40
codegen_flags: <defaults>
</compile_context>

<pallas_src>
import jax
import jax.numpy as jnp
from jax import lax
from jax.experimental import pallas as pl
from jax.experimental.pallas import tpu as pltpu


def _round_up(x, m):
    return ((x + m - 1) // m) * m


def agent_kernel(x_ref, w1_ref, b1_ref, w2d_ref, b2d_ref, outT_ref):
    # x_ref:   (TB, F)  natural (batch-major) layout, no wrapper transpose/pad
    # w1_ref:  (H, F)   PyTorch Linear layout
    # b1_ref:  (H, 1)
    # w2d_ref: (1, H)   = w2[0] - w2[1]
    # b2d_ref: (1, 1)   = b2[0] - b2[1]
    # outT_ref:(2, TB)  lane-dense output (batch on lanes)

    # affine1 + ReLU: contract on the last dim of both operands ("NT" matmul),
    # so the batch lands on the lane axis of h without any wrapper-side copy of x.
    h = lax.dot_general(
        w1_ref[...], x_ref[...],
        dimension_numbers=(((1,), (1,)), ((), ())),
        preferred_element_type=jnp.float32,
    ) + b1_ref[...]                                  # (H, TB)
    h = jnp.maximum(h, 0.0)

    # Folded 2-class head: d = (w2[0]-w2[1]) @ h + (b2[0]-b2[1])  -> (1, TB)
    d = jnp.dot(w2d_ref[...], h, preferred_element_type=jnp.float32) + b2d_ref[...]

    # softmax over 2 classes == sigmoid form (exact f32, no approx reciprocal):
    #   p1 = 1 / (1 + exp(s0 - s1)),  p0 = 1 - p1
    p1 = 1.0 / (1.0 + jnp.exp(d))
    outT_ref[0:1, :] = (1.0 - p1).astype(outT_ref.dtype)
    outT_ref[1:2, :] = p1.astype(outT_ref.dtype)
    # TODO(synk): nn.Dropout(p=0.5) is defined in __init__ but never used in forward();
    # this kernel is eval-mode only if dropout is ever wired in.


def agent_forward(x, w1, b1, w2, b2, *, max_block_b=16384):
    """x: (B, F); w1: (H, F); b1: (H,); w2: (2, H); b2: (2,)  (PyTorch Linear layout)."""
    B, F = x.shape
    H = w1.shape[0]
    assert w1.shape == (H, F) and w2.shape == (2, H) and b1.shape == (H,) and b2.shape == (2,)

    x = x.astype(jnp.float32)
    w1f = w1.astype(jnp.float32)
    b1c = b1.reshape(H, 1).astype(jnp.float32)
    # Fold the 2-class softmax into its sigmoid form at the weight level.
    w2d = (w2[0] - w2[1]).reshape(1, H).astype(jnp.float32)
    b2d = (b2[0] - b2[1]).reshape(1, 1).astype(jnp.float32)

    # Batch tile: big enough to amortize ~0.35us/step grid overhead, multiple of 128,
    # and >= 2 blocks when possible so the "parallel" axis splits across v7x's two TCs.
    if B <= 256:
        TB = B                                          # single full-extent block
    else:
        TB = min(max_block_b, _round_up(pl.cdiv(B, 2), 128))
    n_blocks = pl.cdiv(B, TB)                           # last block may run OOB; Pallas masks it

    cost = pl.CostEstimate(
        flops=2 * B * (F * H + H),
        transcendentals=B,
        bytes_accessed=4 * (B * F + 2 * B + w1.size + b1.size + H + 1),
    )

    outT = pl.pallas_call(
        agent_kernel,
        out_shape=jax.ShapeDtypeStruct((2, B), jnp.float32),
        grid=(n_blocks,),
        in_specs=[
            pl.BlockSpec((TB, F), lambda i: (i, 0)),    # x: natural layout, tiled on batch
            pl.BlockSpec((H, F), lambda i: (0, 0)),     # weights/biases: VMEM-resident
            pl.BlockSpec((H, 1), lambda i: (0, 0)),
            pl.BlockSpec((1, H), lambda i: (0, 0)),
            pl.BlockSpec((1, 1), lambda i: (0, 0)),
        ],
        out_specs=pl.BlockSpec((2, TB), lambda i: (0, i)),
        compiler_params=pltpu.CompilerParams(
            dimension_semantics=("parallel",),          # megacore on v7x; harmless on v5e/v6e
            vmem_limit_bytes=32 * 1024 * 1024,          # ~9 MiB needed at TB=16K; safe on all gens
        ),
        cost_estimate=cost,
    )(x, w1f, b1c, w2d, b2d)

    return outT.T                                       # (B, 2), module layout (tiny transpose)


if __name__ == "__main__":
    # Both the kernel's matmuls and the reference use full-f32 matmul precision so they agree.
    jax.config.update("jax_default_matmul_precision", "highest")

    # Small shapes consistent with the module: feat_dim=30 -> input dim 32, hidden=32, batch=8.
    feat_dim = 30
    in_dim = feat_dim + 2
    hidden_size = 32
    batch = 8

    key = jax.random.PRNGKey(0)
    kx, kw1, kb1, kw2, kb2, kx2 = jax.random.split(key, 6)

    # PyTorch nn.Linear default-style uniform init, (out_features, in_features) layout.
    bound1 = 1.0 / jnp.sqrt(in_dim)
    bound2 = 1.0 / jnp.sqrt(hidden_size)
    w1 = jax.random.uniform(kw1, (hidden_size, in_dim), jnp.float32, -bound1, bound1)
    b1 = jax.random.uniform(kb1, (hidden_size,), jnp.float32, -bound1, bound1)
    w2 = jax.random.uniform(kw2, (2, hidden_size), jnp.float32, -bound2, bound2)
    b2 = jax.random.uniform(kb2, (2,), jnp.float32, -bound2, bound2)

    x = jax.random.normal(kx, (batch, in_dim), jnp.float32)

    def ref_fn(xv):
        h = jnp.maximum(xv @ w1.T + b1, 0.0)
        s = h @ w2.T + b2
        return jax.nn.softmax(s, axis=1)

    # Small batch (single full-extent block).
    out = jax.block_until_ready(agent_forward(x, w1, b1, w2, b2))
    ref = ref_fn(x)
    assert out.shape == (batch, 2)
    assert bool(jnp.allclose(out, ref, atol=2e-3, rtol=2e-3))

    # Exercise the tiled/parallel grid path with a non-divisible batch
    # (2 blocks of 512 covering 1000 rows; last block relies on Pallas OOB masking).
    batch2 = 1000
    x2 = jax.random.normal(kx2, (batch2, in_dim), jnp.float32)
    out2 = jax.block_until_ready(agent_forward(x2, w1, b1, w2, b2))
    ref2 = ref_fn(x2)
    assert out2.shape == (batch2, 2)
    assert bool(jnp.allclose(out2, ref2, atol=2e-3, rtol=2e-3))

    print("KERNEL_OK")
</pallas_src>

<mosaic_0001>
module attributes {stable_mosaic.version = 11 : i64} {
  func.func @agent_kernel(%arg0: i32, %arg1: memref<8x32xf32, #tpu.memory_space<vmem>>, %arg2: memref<32x32xf32, #tpu.memory_space<vmem>>, %arg3: memref<32x1xf32, #tpu.memory_space<vmem>>, %arg4: memref<1x32xf32, #tpu.memory_space<vmem>>, %arg5: memref<1x1xf32, #tpu.memory_space<vmem>>, %arg6: memref<2x8xf32, #tpu.memory_space<vmem>>) attributes {dimension_semantics = [#tpu.dimension_semantics<parallel>], iteration_bounds = array<i64: 1>, scalar_prefetch = 0 : i64, scratch_operands = 0 : i64, tpu.core_type = #tpu.core_type<tc>, window_params = [{transform_indices = @transform_0, window_bounds = array<i64: 8, 32>}, {pipeline_mode = #tpu.pipeline_mode<synchronous>, transform_indices = @transform_1, window_bounds = array<i64: 32, 32>}, {pipeline_mode = #tpu.pipeline_mode<synchronous>, transform_indices = @transform_2, window_bounds = array<i64: 32, 1>}, {pipeline_mode = #tpu.pipeline_mode<synchronous>, transform_indices = @transform_3, window_bounds = array<i64: 1, 32>}, {pipeline_mode = #tpu.pipeline_mode<synchronous>, transform_indices = @transform_4, window_bounds = array<i64: 1, 1>}, {transform_indices = @transform_5, window_bounds = array<i64: 2, 8>}]} {
    %c0 = arith.constant 0 : index
    %c0_0 = arith.constant 0 : index
    %0 = vector.load %arg2[%c0, %c0_0] : memref<32x32xf32, #tpu.memory_space<vmem>>, vector<32x32xf32>
    %c0_1 = arith.constant 0 : index
    %c0_2 = arith.constant 0 : index
    %1 = vector.load %arg1[%c0_1, %c0_2] : memref<8x32xf32, #tpu.memory_space<vmem>>, vector<8x32xf32>
    %cst = arith.constant dense<0.000000e+00> : vector<32x8xf32>
    %2 = tpu.matmul %0, %1, %cst {dimension_numbers = #tpu.dot_dimension_numbers<[1], [1], [0], [0], [0, 0, 1, 0], [], []>, precision = #tpu.contract_precision<fp32>} : vector<32x32xf32>, vector<8x32xf32>, vector<32x8xf32> -> vector<32x8xf32>
    %c0_3 = arith.constant 0 : index
    %c0_4 = arith.constant 0 : index
    %3 = vector.load %arg3[%c0_3, %c0_4] : memref<32x1xf32, #tpu.memory_space<vmem>>, vector<32x1xf32>
    %4 = vector.broadcast %3 : vector<32x1xf32> to vector<32x8xf32>
    %5 = arith.addf %2, %4 : vector<32x8xf32>
    %cst_5 = arith.constant 0.000000e+00 : f32
    %6 = vector.broadcast %cst_5 : f32 to vector<32x8xf32>
    %7 = arith.maximumf %5, %6 : vector<32x8xf32>
    %c0_6 = arith.constant 0 : index
    %c0_7 = arith.constant 0 : index
    %8 = vector.load %arg4[%c0_6, %c0_7] : memref<1x32xf32, #tpu.memory_space<vmem>>, vector<1x32xf32>
    %cst_8 = arith.constant dense<0.000000e+00> : vector<1x8xf32>
    %9 = tpu.matmul %8, %7, %cst_8 {dimension_numbers = #tpu.dot_dimension_numbers<[1], [0], [0], [1], [0, 0, 1, 1], [], []>, precision = #tpu.contract_precision<fp32>} : vector<1x32xf32>, vector<32x8xf32>, vector<1x8xf32> -> vector<1x8xf32>
    %c0_9 = arith.constant 0 : index
    %c0_10 = arith.constant 0 : index
    %10 = vector.load %arg5[%c0_9, %c0_10] : memref<1x1xf32, #tpu.memory_space<vmem>>, vector<1x1xf32>
    %11 = vector.broadcast %10 : vector<1x1xf32> to vector<1x8xf32>
    %12 = arith.addf %9, %11 : vector<1x8xf32>
    %13 = math.exp %12 : vector<1x8xf32>
    %cst_11 = arith.constant 1.000000e+00 : f32
    %14 = vector.broadcast %cst_11 : f32 to vector<1x8xf32>
    %15 = arith.addf %14, %13 : vector<1x8xf32>
    %cst_12 = arith.constant 1.000000e+00 : f32
    %16 = vector.broadcast %cst_12 : f32 to vector<1x8xf32>
    %17 = arith.divf %16, %15 : vector<1x8xf32>
    %cst_13 = arith.constant 1.000000e+00 : f32
    %18 = vector.broadcast %cst_13 : f32 to vector<1x8xf32>
    %19 = arith.subf %18, %17 : vector<1x8xf32>
    %c0_14 = arith.constant 0 : index
    %c0_15 = arith.constant 0 : index
    %20 = vector.load %arg6[%c0_14, %c0_15] : memref<2x8xf32, #tpu.memory_space<vmem>>, vector<1x8xf32>
    tpu.vector_store %arg6[%c0_14, %c0_15], %19 {strides = array<i32>} : memref<2x8xf32, #tpu.memory_space<vmem>>, vector<1x8xf32>,
    %c1 = arith.constant 1 : index
    %c0_16 = arith.constant 0 : index
    %21 = vector.load %arg6[%c1, %c0_16] : memref<2x8xf32, #tpu.memory_space<vmem>>, vector<1x8xf32>
    tpu.vector_store %arg6[%c1, %c0_16], %17 {strides = array<i32>} : memref<2x8xf32, #tpu.memory_space<vmem>>, vector<1x8xf32>,
    return
  }
  func.func @transform_0(%arg0: i32) -> (i32, i32) {
    %c0_i32 = arith.constant 0 : i32
    %c0_i32_0 = arith.constant 0 : i32
    return %arg0, %c0_i32 : i32, i32
  }
  func.func @transform_1(%arg0: i32) -> (i32, i32) {
    %c0_i32 = arith.constant 0 : i32
    %c0_i32_0 = arith.constant 0 : i32
    %c0_i32_1 = arith.constant 0 : i32
    return %c0_i32, %c0_i32_0 : i32, i32
  }
  func.func @transform_2(%arg0: i32) -> (i32, i32) {
    %c0_i32 = arith.constant 0 : i32
    %c0_i32_0 = arith.constant 0 : i32
    %c0_i32_1 = arith.constant 0 : i32
    return %c0_i32, %c0_i32_0 : i32, i32
  }
  func.func @transform_3(%arg0: i32) -> (i32, i32) {
    %c0_i32 = arith.constant 0 : i32
    %c0_i32_0 = arith.constant 0 : i32
    %c0_i32_1 = arith.constant 0 : i32
    return %c0_i32, %c0_i32_0 : i32, i32
  }
  func.func @transform_4(%arg0: i32) -> (i32, i32) {
    %c0_i32 = arith.constant 0 : i32
    %c0_i32_0 = arith.constant 0 : i32
    %c0_i32_1 = arith.constant 0 : i32
    return %c0_i32, %c0_i32_0 : i32, i32
  }
  func.func @transform_5(%arg0: i32) -> (i32, i32) {
    %c0_i32 = arith.constant 0 : i32
    %c0_i32_0 = arith.constant 0 : i32
    return %c0_i32, %arg0 : i32, i32
  }
}

</mosaic_0001>

<llo_original>
// kernel: tpu_custom_call.1
$region0: #{tpu_custom_call.1}
  #allocation0 [shape = 'u32[]', space=smem, size = 0x4, offset = 0x4, fixed_abs, tag = 'smem constant byte address 0x4 - core index']
  #allocation1 [shape = 'u32[144,128]{1,0:T(1,128)}', space=vmem, size = 0x12000, scoped, tag = 'internal scratch']
  #allocation2 [shape = 'f32[1,1]{1,0:T(1,128)S(1)}', space=vmem, size = 0x200, scoped, tag = 'scoped memory for tpu_custom_call.1']
  %s0 = inlined_call_operand.vmem [shape: f32[8,32], index: 0, kind: input, shape index: {}]
  %s1 = inlined_call_operand.vmem [shape: f32[32,32], index: 1, kind: input, shape index: {}]
  %s2 = inlined_call_operand.vmem [shape: f32[32,1], index: 2, kind: input, shape index: {}]
  %s3 = inlined_call_operand.vmem [shape: f32[1,32], index: 3, kind: input, shape index: {}]
  %s4 = inlined_call_operand.<no memory space> [shape: f32[1,1], index: 4, kind: input, shape index: {}]
  %s5 = inlined_call_operand.hbm [shape: f32[2,8], index: 5, kind: output, shape index: {}]
  %s6 = sld [smem:[#allocation0]]
  $region30: #{tpu_custom_call.1} parent=0
    _
  %s8 = ssub.s32 1, %s6
  %s9 = scalar_select 0, %s8, %s6
  %v10 = vstv %s4
  %11 = vst [vmem:[#allocation2] sm:$0x1] %v10
  $region1: #{tpu_custom_call.1} parent=0
    #allocation3 [shape = 'u8[1024]{0}', space=vmem, size = 0x400, scoped, tag = 'output window, operand 0, single buffered']
    #allocation4 [shape = 's32[1]{0}', space=sflag, size = 0x4, scoped, tag = 'scoped memory for tpu_custom_call.1']
    %12 = vsyncpa [#allocation4], 0
    // Predicated region
    $region2: #{tpu_custom_call.1} parent=1 // pred_check
      _
    $region3: #{tpu_custom_call.1} parent=1 // pred_check_branch
      %14 = sbr.rel (0) target = $region5
    $region4: #{tpu_custom_call.1} parent=1 // pred_region
      _
    $region5: #{tpu_custom_call.1} parent=1 // pred_fallthru
      _
    // Predicated region
    $region6: #{tpu_custom_call.1} parent=1 // pred_check
      _
    $region7: #{tpu_custom_call.1} parent=1 // pred_check_branch
      %16 = sbr.rel (0) target = $region9
    $region8: #{tpu_custom_call.1} parent=1 // pred_region
      _
    $region9: #{tpu_custom_call.1} parent=1 // pred_fallthru
      _
    // Predicated region
    $region10: #{tpu_custom_call.1} parent=1 // pred_check
      _
    $region11: #{tpu_custom_call.1} parent=1 // pred_check_branch
      %18 = sbr.rel (0) target = $region13
    $region12: #{tpu_custom_call.1} parent=1 // pred_region
      _
    $region13: #{tpu_custom_call.1} parent=1 // pred_fallthru
      _
    // Predicated region
    $region14: #{tpu_custom_call.1} parent=1 // pred_check
      _
    $region15: #{tpu_custom_call.1} parent=1 // pred_check_branch
      %20 = sbr.rel (0) target = $region17
    $region16: #{tpu_custom_call.1} parent=1 // pred_region
      _
    $region17: #{tpu_custom_call.1} parent=1 // pred_fallthru
      _
    // Predicated region
    $region18: #{tpu_custom_call.1} parent=1 // pred_check
      _
    $region19: #{tpu_custom_call.1} parent=1 // pred_check_branch
      %22 = sbr.rel (0) target = $region21
    $region20: #{tpu_custom_call.1} parent=1 // pred_region
      _
    $region21: #{tpu_custom_call.1} parent=1 // pred_fallthru
      _
    %v23 = vld [vmem:[%s1] sm:$0xff]
    %v24 = vld [vmem:[%s1 + $0x8] sm:$0xff]
    %v25 = vld [vmem:[%s1 + $0x10] sm:$0xff]
    %v26 = vld [vmem:[%s1 + $0x18] sm:$0xff]
    %v27 = vld [vmem:[%s0] sm:$0xff]
    %v28 = vld [vmem:[%s2] sm:$0xff]
    %v29 = vld [vmem:[%s2 + $0x8] sm:$0xff]
    %v30 = vld [vmem:[%s2 + $0x10] sm:$0xff]
    %v31 = vld [vmem:[%s2 + $0x18] sm:$0xff]
    %33 = vset.pattern.permute.xlu0 0
    %34 = vperm.xlu0 %33, %v28
    %v35 = vpop.permute.xlu0 %34
    %38 = vset.pattern.permute.xlu0 0
    %39 = vperm.xlu0 %38, %v29
    %v40 = vpop.permute.xlu0 %39
    %43 = vset.pattern.permute.xlu0 0
    %44 = vperm.xlu0 %43, %v30
    %v45 = vpop.permute.xlu0 %44
    %48 = vset.pattern.permute.xlu0 0
    %49 = vperm.xlu0 %48, %v31
    %v50 = vpop.permute.xlu0 %49
    %vm52 = vcmask 261120
    %v54 = vsel %vm52, %v23, 0
    %v57 = vsel %vm52, %v24, 0
    %v60 = vsel %vm52, %v25, 0
    %v63 = vsel %vm52, %v26, 0
    %v66 = vsel %vm52, %v27, 0
    %68 = vmatprep.subr.mxu0 0.0
    %v69 = vand.u32 %v66, 4294901760
    %70 = vmatpush1.xpose.msra.mxu0 %v69
    %71 = vmatprep.subr.mxu0 0.0
    %72 = vmatpush1.xpose.msra.mxu0 0.0
    %73 = vmatprep.subr.mxu0 0.0
    %74 = vmatpush1.xpose.msra.mxu0 0.0
    %75 = vmatprep.subr.mxu0 0.0
    %76 = vmatpush1.xpose.msra.mxu0 0.0
    %77 = vmatprep.subr.mxu0 0.0
    %78 = vmatpush1.xpose.msra.mxu0 0.0
    %79 = vmatprep.subr.mxu0 0.0
    %80 = vmatpush1.xpose.msra.mxu0 0.0
    %81 = vmatprep.subr.mxu0 0.0
    %82 = vmatpush1.xpose.msra.mxu0 0.0
    %83 = vmatprep.subr.mxu0 0.0
    %84 = vmatpush1.xpose.msra.mxu0 0.0
    %85 = vmatprep.subr.mxu0 0.0
    %86 = vmatpush1.xpose.msra.mxu0 0.0
    %87 = vmatprep.subr.mxu0 0.0
    %88 = vmatpush1.xpose.msra.mxu0 0.0
    %89 = vmatprep.subr.mxu0 0.0
    %90 = vmatpush1.xpose.msra.mxu0 0.0
    %91 = vmatprep.subr.mxu0 0.0
    %92 = vmatpush1.xpose.msra.mxu0 0.0
    %93 = vmatprep.subr.mxu0 0.0
    %94 = vmatpush1.xpose.msra.mxu0 0.0
    %95 = vmatprep.subr.mxu0 0.0
    %96 = vmatpush1.xpose.msra.mxu0 0.0
    %97 = vmatprep.subr.mxu0 0.0
    %98 = vmatpush1.xpose.msra.mxu0 0.0
    %99 = vmatprep.subr.mxu0 0.0
    %100 = vmatpush1.xpose.msra.mxu0 0.0
    %101 = vmatprep.subr.mxu0 0.0
    %102 = vmatpush1.xpose.msra.mxu0 0.0
    %103 = vmatprep.subr.mxu0 0.0
    %104 = vmatpush1.xpose.msra.mxu0 0.0
    %105 = vmatprep.subr.mxu0 0.0
    %106 = vmatpush1.xpose.msra.mxu0 0.0
    %107 = vmatprep.subr.mxu0 0.0
    %108 = vmatpush1.xpose.msra.mxu0 0.0
    %109 = vmatprep.subr.mxu0 0.0
    %110 = vmatpush1.xpose.msra.mxu0 0.0
    %111 = vmatprep.subr.mxu0 0.0
    %112 = vmatpush1.xpose.msra.mxu0 0.0
    %113 = vmatprep.subr.mxu0 0.0
    %114 = vmatpush1.xpose.msra.mxu0 0.0
    %115 = vmatprep.subr.mxu0 0.0
    %116 = vmatpush1.xpose.msra.mxu0 0.0
    %117 = vmatprep.subr.mxu0 0.0
    %118 = vmatpush1.xpose.msra.mxu0 0.0
    %119 = vmatprep.subr.mxu0 0.0
    %120 = vmatpush1.xpose.msra.mxu0 0.0
    %121 = vmatprep.subr.mxu0 0.0
    %122 = vmatpush1.xpose.msra.mxu0 0.0
    %123 = vmatprep.subr.mxu0 0.0
    %124 = vmatpush1.xpose.msra.mxu0 0.0
    %125 = vmatprep.subr.mxu0 0.0
    %126 = vmatpush1.xpose.msra.mxu0 0.0
    %127 = vmatprep.subr.mxu0 0.0
    %128 = vmatpush1.xpose.msra.mxu0 0.0
    %129 = vmatprep.subr.mxu0 0.0
    %130 = vmatpush1.xpose.msra.mxu0 0.0
    %131 = vmatprep.subr.mxu0 0.0
    %132 = vmatpush1.xpose.msra.mxu0 0.0
    %133 = vmatprep.mubr.f32.mxu0 0.0
    %v134 = vand.u32 %v54, 4294901760
    %v135 = vsub.f32 %v54, %v134
    %v136 = vand.u32 %v135, 4294901760
    %v137 = vsub.f32 %v135, %v136
    %v138 = vand.u32 %v137, 4294901760
    %139 = vmatmul.mubr.f32.gmra.mrb[0].mxu0 %v138
    %v140 = vpop.f32.mrb[0].mxu0
    %v141 = vadd.f32 %v35, %v140
    %v142 = vpop.f32.mrb[0].mxu0
    %143 = vmatprep.mubr.f32.mxu0 0.0
    %v144 = vand.u32 %v57, 4294901760
    %v145 = vsub.f32 %v57, %v144
    %v146 = vand.u32 %v145, 4294901760
    %v147 = vsub.f32 %v145, %v146
    %v148 = vand.u32 %v147, 4294901760
    %149 = vmatmul.mubr.f32.gmra.mrb[0].mxu0 %v148
    %v150 = vpop.f32.mrb[0].mxu0
    %v151 = vadd.f32 %v40, %v150
    %v152 = vpop.f32.mrb[0].mxu0
    %153 = vmatprep.mubr.f32.mxu0 0.0
    %v154 = vand.u32 %v60, 4294901760
    %v155 = vsub.f32 %v60, %v154
    %v156 = vand.u32 %v155, 4294901760
    %v157 = vsub.f32 %v155, %v156
    %v158 = vand.u32 %v157, 4294901760
    %159 = vmatmul.mubr.f32.gmra.mrb[0].mxu0 %v158
    %v160 = vpop.f32.mrb[0].mxu0
    %v161 = vadd.f32 %v45, %v160
    %v162 = vpop.f32.mrb[0].mxu0
    %163 = vmatprep.mubr.f32.mxu0 0.0
    %v164 = vand.u32 %v63, 4294901760
    %v165 = vsub.f32 %v63, %v164
    %v166 = vand.u32 %v165, 4294901760
    %v167 = vsub.f32 %v165, %v166
    %v168 = vand.u32 %v167, 4294901760
    %169 = vmatmul.mubr.f32.gmra.mrb[0].mxu0 %v168
    %v170 = vpop.f32.mrb[0].mxu0
    %v171 = vadd.f32 %v50, %v170
    %v172 = vpop.f32.mrb[0].mxu0
    %173 = vdwg.mxu0
    %174 = vmatprep.subr.mxu0 0.0
    %v175 = vand.u32 %v66, 4294901760
    %v176 = vsub.f32 %v66, %v175
    %v177 = vand.u32 %v176, 4294901760
    %v178 = vsub.f32 %v176, %v177
    %v179 = vand.u32 %v178, 4294901760
    %180 = vmatpush1.xpose.msra.mxu0 %v179
    %181 = vmatprep.subr.mxu0 0.0
    %182 = vmatpush1.xpose.msra.mxu0 0.0
    %183 = vmatprep.subr.mxu0 0.0
    %184 = vmatpush1.xpose.msra.mxu0 0.0
    %185 = vmatprep.subr.mxu0 0.0
    %186 = vmatpush1.xpose.msra.mxu0 0.0
    %187 = vmatprep.subr.mxu0 0.0
    %188 = vmatpush1.xpose.msra.mxu0 0.0
    %189 = vmatprep.subr.mxu0 0.0
    %190 = vmatpush1.xpose.msra.mxu0 0.0
    %191 = vmatprep.subr.mxu0 0.0
    %192 = vmatpush1.xpose.msra.mxu0 0.0
    %193 = vmatprep.subr.mxu0 0.0
    %194 = vmatpush1.xpose.msra.mxu0 0.0
    %195 = vmatprep.subr.mxu0 0.0
    %196 = vmatpush1.xpose.msra.mxu0 0.0
    %197 = vmatprep.subr.mxu0 0.0
    %198 = vmatpush1.xpose.msra.mxu0 0.0
    %199 = vmatprep.subr.mxu0 0.0
    %200 = vmatpush1.xpose.msra.mxu0 0.0
    %201 = vmatprep.subr.mxu0 0.0
    %202 = vmatpush1.xpose.msra.mxu0 0.0
    %203 = vmatprep.subr.mxu0 0.0
    %204 = vmatpush1.xpose.msra.mxu0 0.0
    %205 = vmatprep.subr.mxu0 0.0
    %206 = vmatpush1.xpose.msra.mxu0 0.0
    %207 = vmatprep.subr.mxu0 0.0
    %208 = vmatpush1.xpose.msra.mxu0 0.0
    %209 = vmatprep.subr.mxu0 0.0
    %210 = vmatpush1.xpose.msra.mxu0 0.0
    %211 = vmatprep.subr.mxu0 0.0
    %212 = vmatpush1.xpose.msra.mxu0 0.0
    %213 = vmatprep.subr.mxu0 0.0
    %214 = vmatpush1.xpose.msra.mxu0 0.0
    %215 = vmatprep.subr.mxu0 0.0
    %216 = vmatpush1.xpose.msra.mxu0 0.0
    %217 = vmatprep.subr.mxu0 0.0
    %218 = vmatpush1.xpose.msra.mxu0 0.0
    %219 = vmatprep.subr.mxu0 0.0
    %220 = vmatpush1.xpose.msra.mxu0 0.0
    %221 = vmatprep.subr.mxu0 0.0
    %222 = vmatpush1.xpose.msra.mxu0 0.0
    %223 = vmatprep.subr.mxu0 0.0
    %224 = vmatpush1.xpose.msra.mxu0 0.0
    %225 = vmatprep.subr.mxu0 0.0
    %226 = vmatpush1.xpose.msra.mxu0 0.0
    %227 = vmatprep.subr.mxu0 0.0
    %228 = vmatpush1.xpose.msra.mxu0 0.0
    %229 = vmatprep.subr.mxu0 0.0
    %230 = vmatpush1.xpose.msra.mxu0 0.0
    %231 = vmatprep.subr.mxu0 0.0
    %232 = vmatpush1.xpose.msra.mxu0 0.0
    %233 = vmatprep.subr.mxu0 0.0
    %234 = vmatpush1.xpose.msra.mxu0 0.0
    %235 = vmatprep.subr.mxu0 0.0
    %236 = vmatpush1.xpose.msra.mxu0 0.0
    %237 = vmatprep.subr.mxu0 0.0
    %238 = vmatpush1.xpose.msra.mxu0 0.0
    %239 = vmatprep.subr.mxu0 0.0
    %240 = vmatpush1.xpose.msra.mxu0 0.0
    %241 = vmatprep.subr.mxu0 0.0
    %242 = vmatpush1.xpose.msra.mxu0 0.0
    %243 = vmatprep.mubr.f32.mxu0 0.0
    %v244 = vand.u32 %v54, 4294901760
    %245 = vmatmul.mubr.f32.gmra.mrb[0].mxu0 %v244
    %v246 = vpop.f32.mrb[0].mxu0
    %v247 = vadd.f32 %v141, %v246
    %v248 = vpop.f32.mrb[0].mxu0
    %249 = vmatprep.mubr.f32.mxu0 0.0
    %v250 = vand.u32 %v57, 4294901760
    %251 = vmatmul.mubr.f32.gmra.mrb[0].mxu0 %v250
    %v252 = vpop.f32.mrb[0].mxu0
    %v253 = vadd.f32 %v151, %v252
    %v254 = vpop.f32.mrb[0].mxu0
    %255 = vmatprep.mubr.f32.mxu0 0.0
    %v256 = vand.u32 %v60, 4294901760
    %257 = vmatmul.mubr.f32.gmra.mrb[0].mxu0 %v256
    %v258 = vpop.f32.mrb[0].mxu0
    %v259 = vadd.f32 %v161, %v258
    %v260 = vpop.f32.mrb[0].mxu0
    %261 = vmatprep.mubr.f32.mxu0 0.0
    %v262 = vand.u32 %v63, 4294901760
    %263 = vmatmul.mubr.f32.gmra.mrb[0].mxu0 %v262
    %v264 = vpop.f32.mrb[0].mxu0
    %v265 = vadd.f32 %v171, %v264
    %v266 = vpop.f32.mrb[0].mxu0
    %267 = vdwg.mxu0
    %268 = vmatprep.subr.mxu0 0.0
    %v269 = vand.u32 %v66, 4294901760
    %v270 = vsub.f32 %v66, %v269
    %271 = vmatpush1.xpose.msra.mxu0 %v270
    %272 = vmatprep.subr.mxu0 0.0
    %273 = vmatpush1.xpose.msra.mxu0 0.0
    %274 = vmatprep.subr.mxu0 0.0
    %275 = vmatpush1.xpose.msra.mxu0 0.0
    %276 = vmatprep.subr.mxu0 0.0
    %277 = vmatpush1.xpose.msra.mxu0 0.0
    %278 = vmatprep.subr.mxu0 0.0
    %279 = vmatpush1.xpose.msra.mxu0 0.0
    %280 = vmatprep.subr.mxu0 0.0
    %281 = vmatpush1.xpose.msra.mxu0 0.0
    %282 = vmatprep.subr.mxu0 0.0
    %283 = vmatpush1.xpose.msra.mxu0 0.0
    %284 = vmatprep.subr.mxu0 0.0
    %285 = vmatpush1.xpose.msra.mxu0 0.0
    %286 = vmatprep.subr.mxu0 0.0
    %287 = vmatpush1.xpose.msra.mxu0 0.0
    %288 = vmatprep.subr.mxu0 0.0
    %289 = vmatpush1.xpose.msra.mxu0 0.0
    %290 = vmatprep.subr.mxu0 0.0
    %291 = vmatpush1.xpose.msra.mxu0 0.0
    %292 = vmatprep.subr.mxu0 0.0
    %293 = vmatpush1.xpose.msra.mxu0 0.0
    %294 = vmatprep.subr.mxu0 0.0
    %295 = vmatpush1.xpose.msra.mxu0 0.0
    %296 = vmatprep.subr.mxu0 0.0
    %297 = vmatpush1.xpose.msra.mxu0 0.0
    %298 = vmatprep.subr.mxu0 0.0
    %299 = vmatpush1.xpose.msra.mxu0 0.0
    %300 = vmatprep.subr.mxu0 0.0
    %301 = vmatpush1.xpose.msra.mxu0 0.0
    %302 = vmatprep.subr.mxu0 0.0
    %303 = vmatpush1.xpose.msra.mxu0 0.0
    %304 = vmatprep.subr.mxu0 0.0
    %305 = vmatpush1.xpose.msra.mxu0 0.0
    %306 = vmatprep.subr.mxu0 0.0
    %307 = vmatpush1.xpose.msra.mxu0 0.0
    %308 = vmatprep.subr.mxu0 0.0
    %309 = vmatpush1.xpose.msra.mxu0 0.0
    %310 = vmatprep.subr.mxu0 0.0
    %311 = vmatpush1.xpose.msra.mxu0 0.0
    %312 = vmatprep.subr.mxu0 0.0
    %313 = vmatpush1.xpose.msra.mxu0 0.0
    %314 = vmatprep.subr.mxu0 0.0
    %315 = vmatpush1.xpose.msra.mxu0 0.0
    %316 = vmatprep.subr.mxu0 0.0
    %317 = vmatpush1.xpose.msra.mxu0 0.0
    %318 = vmatprep.subr.mxu0 0.0
    %319 = vmatpush1.xpose.msra.mxu0 0.0
    %320 = vmatprep.subr.mxu0 0.0
    %321 = vmatpush1.xpose.msra.mxu0 0.0
    %322 = vmatprep.subr.mxu0 0.0
    %323 = vmatpush1.xpose.msra.mxu0 0.0
    %324 = vmatprep.subr.mxu0 0.0
    %325 = vmatpush1.xpose.msra.mxu0 0.0
    %326 = vmatprep.subr.mxu0 0.0
    %327 = vmatpush1.xpose.msra.mxu0 0.0
    %328 = vmatprep.subr.mxu0 0.0
    %329 = vmatpush1.xpose.msra.mxu0 0.0
    %330 = vmatprep.subr.mxu0 0.0
    %331 = vmatpush1.xpose.msra.mxu0 0.0
    %332 = vmatprep.subr.mxu0 0.0
    %333 = vmatpush1.xpose.msra.mxu0 0.0
    %334 = vmatprep.mubr.f32.mxu0 0.0
    %v335 = vand.u32 %v54, 4294901760
    %v336 = vsub.f32 %v54, %v335
    %337 = vmatmul.mubr.f32.gmra.mrb[0].mxu0 %v336
    %v338 = vpop.f32.mrb[0].mxu0
    %v339 = vadd.f32 %v247, %v338
    %v340 = vpop.f32.mrb[0].mxu0
    %341 = vmatprep.mubr.f32.mxu0 0.0
    %v342 = vand.u32 %v57, 4294901760
    %v343 = vsub.f32 %v57, %v342
    %344 = vmatmul.mubr.f32.gmra.mrb[0].mxu0 %v343
    %v345 = vpop.f32.mrb[0].mxu0
    %v346 = vadd.f32 %v253, %v345
    %v347 = vpop.f32.mrb[0].mxu0
    %348 = vmatprep.mubr.f32.mxu0 0.0
    %v349 = vand.u32 %v60, 4294901760
    %v350 = vsub.f32 %v60, %v349
    %351 = vmatmul.mubr.f32.gmra.mrb[0].mxu0 %v350
    %v352 = vpop.f32.mrb[0].mxu0
    %v353 = vadd.f32 %v259, %v352
    %v354 = vpop.f32.mrb[0].mxu0
    %355 = vmatprep.mubr.f32.mxu0 0.0
    %v356 = vand.u32 %v63, 4294901760
    %v357 = vsub.f32 %v63, %v356
    %358 = vmatmul.mubr.f32.gmra.mrb[0].mxu0 %v357
    %v359 = vpop.f32.mrb[0].mxu0
    %v360 = vadd.f32 %v265, %v359
    %v361 = vpop.f32.mrb[0].mxu0
    %362 = vdwg.mxu0
    %363 = vmatprep.subr.mxu0 0.0
    %v364 = vand.u32 %v66, 4294901760
    %365 = vmatpush1.xpose.msra.mxu0 %v364
    %366 = vmatprep.subr.mxu0 0.0
    %367 = vmatpush1.xpose.msra.mxu0 0.0
    %368 = vmatprep.subr.mxu0 0.0
    %369 = vmatpush1.xpose.msra.mxu0 0.0
    %370 = vmatprep.subr.mxu0 0.0
    %371 = vmatpush1.xpose.msra.mxu0 0.0
    %372 = vmatprep.subr.mxu0 0.0
    %373 = vmatpush1.xpose.msra.mxu0 0.0
    %374 = vmatprep.subr.mxu0 0.0
    %375 = vmatpush1.xpose.msra.mxu0 0.0
    %376 = vmatprep.subr.mxu0 0.0
    %377 = vmatpush1.xpose.msra.mxu0 0.0
    %378 = vmatprep.subr.mxu0 0.0
    %379 = vmatpush1.xpose.msra.mxu0 0.0
    %380 = vmatprep.subr.mxu0 0.0
    %381 = vmatpush1.xpose.msra.mxu0 0.0
    %382 = vmatprep.subr.mxu0 0.0
    %383 = vmatpush1.xpose.msra.mxu0 0.0
    %384 = vmatprep.subr.mxu0 0.0
    %385 = vmatpush1.xpose.msra.mxu0 0.0
    %386 = vmatprep.subr.mxu0 0.0
    %387 = vmatpush1.xpose.msra.mxu0 0.0
    %388 = vmatprep.subr.mxu0 0.0
    %389 = vmatpush1.xpose.msra.mxu0 0.0
    %390 = vmatprep.subr.mxu0 0.0
    %391 = vmatpush1.xpose.msra.mxu0 0.0
    %392 = vmatprep.subr.mxu0 0.0
    %393 = vmatpush1.xpose.msra.mxu0 0.0
    %394 = vmatprep.subr.mxu0 0.0
    %395 = vmatpush1.xpose.msra.mxu0 0.0
    %396 = vmatprep.subr.mxu0 0.0
    %397 = vmatpush1.xpose.msra.mxu0 0.0
    %398 = vmatprep.subr.mxu0 0.0
    %399 = vmatpush1.xpose.msra.mxu0 0.0
    %400 = vmatprep.subr.mxu0 0.0
    %401 = vmatpush1.xpose.msra.mxu0 0.0
    %402 = vmatprep.subr.mxu0 0.0
    %403 = vmatpush1.xpose.msra.mxu0 0.0
    %404 = vmatprep.subr.mxu0 0.0
    %405 = vmatpush1.xpose.msra.mxu0 0.0
    %406 = vmatprep.subr.mxu0 0.0
    %407 = vmatpush1.xpose.msra.mxu0 0.0
    %408 = vmatprep.subr.mxu0 0.0
    %409 = vmatpush1.xpose.msra.mxu0 0.0
    %410 = vmatprep.subr.mxu0 0.0
    %411 = vmatpush1.xpose.msra.mxu0 0.0
    %412 = vmatprep.subr.mxu0 0.0
    %413 = vmatpush1.xpose.msra.mxu0 0.0
    %414 = vmatprep.subr.mxu0 0.0
    %415 = vmatpush1.xpose.msra.mxu0 0.0
    %416 = vmatprep.subr.mxu0 0.0
    %417 = vmatpush1.xpose.msra.mxu0 0.0
    %418 = vmatprep.subr.mxu0 0.0
    %419 = vmatpush1.xpose.msra.mxu0 0.0
    %420 = vmatprep.subr.mxu0 0.0
    %421 = vmatpush1.xpose.msra.mxu0 0.0
    %422 = vmatprep.subr.mxu0 0.0
    %423 = vmatpush1.xpose.msra.mxu0 0.0
    %424 = vmatprep.subr.mxu0 0.0
    %425 = vmatpush1.xpose.msra.mxu0 0.0
    %426 = vmatprep.subr.mxu0 0.0
    %427 = vmatpush1.xpose.msra.mxu0 0.0
    %428 = vmatprep.mubr.f32.mxu0 0.0
    %v429 = vand.u32 %v54, 4294901760
    %v430 = vsub.f32 %v54, %v429
    %v431 = vand.u32 %v430, 4294901760
    %432 = vmatmul.mubr.f32.gmra.mrb[0].mxu0 %v431
    %v433 = vpop.f32.mrb[0].mxu0
    %v434 = vadd.f32 %v339, %v433
    %v435 = vpop.f32.mrb[0].mxu0
    %436 = vmatprep.mubr.f32.mxu0 0.0
    %v437 = vand.u32 %v57, 4294901760
    %v438 = vsub.f32 %v57, %v437
    %v439 = vand.u32 %v438, 4294901760
    %440 = vmatmul.mubr.f32.gmra.mrb[0].mxu0 %v439
    %v441 = vpop.f32.mrb[0].mxu0
    %v442 = vadd.f32 %v346, %v441
    %v443 = vpop.f32.mrb[0].mxu0
    %444 = vmatprep.mubr.f32.mxu0 0.0
    %v445 = vand.u32 %v60, 4294901760
    %v446 = vsub.f32 %v60, %v445
    %v447 = vand.u32 %v446, 4294901760
    %448 = vmatmul.mubr.f32.gmra.mrb[0].mxu0 %v447
    %v449 = vpop.f32.mrb[0].mxu0
    %v450 = vadd.f32 %v353, %v449
    %v451 = vpop.f32.mrb[0].mxu0
    %452 = vmatprep.mubr.f32.mxu0 0.0
    %v453 = vand.u32 %v63, 4294901760
    %v454 = vsub.f32 %v63, %v453
    %v455 = vand.u32 %v454, 4294901760
    %456 = vmatmul.mubr.f32.gmra.mrb[0].mxu0 %v455
    %v457 = vpop.f32.mrb[0].mxu0
    %v458 = vadd.f32 %v360, %v457
    %v459 = vpop.f32.mrb[0].mxu0
    %460 = vdwg.mxu0
    %461 = vmatprep.subr.mxu0 0.0
    %v462 = vand.u32 %v66, 4294901760
    %v463 = vsub.f32 %v66, %v462
    %v464 = vand.u32 %v463, 4294901760
    %465 = vmatpush1.xpose.msra.mxu0 %v464
    %466 = vmatprep.subr.mxu0 0.0
    %467 = vmatpush1.xpose.msra.mxu0 0.0
    %468 = vmatprep.subr.mxu0 0.0
    %469 = vmatpush1.xpose.msra.mxu0 0.0
    %470 = vmatprep.subr.mxu0 0.0
    %471 = vmatpush1.xpose.msra.mxu0 0.0
    %472 = vmatprep.subr.mxu0 0.0
    %473 = vmatpush1.xpose.msra.mxu0 0.0
    %474 = vmatprep.subr.mxu0 0.0
    %475 = vmatpush1.xpose.msra.mxu0 0.0
    %476 = vmatprep.subr.mxu0 0.0
    %477 = vmatpush1.xpose.msra.mxu0 0.0
    %478 = vmatprep.subr.mxu0 0.0
    %479 = vmatpush1.xpose.msra.mxu0 0.0
    %480 = vmatprep.subr.mxu0 0.0
    %481 = vmatpush1.xpose.msra.mxu0 0.0
    %482 = vmatprep.subr.mxu0 0.0
    %483 = vmatpush1.xpose.msra.mxu0 0.0
    %484 = vmatprep.subr.mxu0 0.0
    %485 = vmatpush1.xpose.msra.mxu0 0.0
    %486 = vmatprep.subr.mxu0 0.0
    %487 = vmatpush1.xpose.msra.mxu0 0.0
    %488 = vmatprep.subr.mxu0 0.0
    %489 = vmatpush1.xpose.msra.mxu0 0.0
    %490 = vmatprep.subr.mxu0 0.0
    %491 = vmatpush1.xpose.msra.mxu0 0.0
    %492 = vmatprep.subr.mxu0 0.0
    %493 = vmatpush1.xpose.msra.mxu0 0.0
    %494 = vmatprep.subr.mxu0 0.0
    %495 = vmatpush1.xpose.msra.mxu0 0.0
    %496 = vmatprep.subr.mxu0 0.0
    %497 = vmatpush1.xpose.msra.mxu0 0.0
    %498 = vmatprep.subr.mxu0 0.0
    %499 = vmatpush1.xpose.msra.mxu0 0.0
    %500 = vmatprep.subr.mxu0 0.0
    %501 = vmatpush1.xpose.msra.mxu0 0.0
    %502 = vmatprep.subr.mxu0 0.0
    %503 = vmatpush1.xpose.msra.mxu0 0.0
    %504 = vmatprep.subr.mxu0 0.0
    %505 = vmatpush1.xpose.msra.mxu0 0.0
    %506 = vmatprep.subr.mxu0 0.0
    %507 = vmatpush1.xpose.msra.mxu0 0.0
    %508 = vmatprep.subr.mxu0 0.0
    %509 = vmatpush1.xpose.msra.mxu0 0.0
    %510 = vmatprep.subr.mxu0 0.0
    %511 = vmatpush1.xpose.msra.mxu0 0.0
    %512 = vmatprep.subr.mxu0 0.0
    %513 = vmatpush1.xpose.msra.mxu0 0.0
    %514 = vmatprep.subr.mxu0 0.0
    %515 = vmatpush1.xpose.msra.mxu0 0.0
    %516 = vmatprep.subr.mxu0 0.0
    %517 = vmatpush1.xpose.msra.mxu0 0.0
    %518 = vmatprep.subr.mxu0 0.0
    %519 = vmatpush1.xpose.msra.mxu0 0.0
    %520 = vmatprep.subr.mxu0 0.0
    %521 = vmatpush1.xpose.msra.mxu0 0.0
    %522 = vmatprep.subr.mxu0 0.0
    %523 = vmatpush1.xpose.msra.mxu0 0.0
    %524 = vmatprep.subr.mxu0 0.0
    %525 = vmatpush1.xpose.msra.mxu0 0.0
    %526 = vmatprep.subr.mxu0 0.0
    %527 = vmatpush1.xpose.msra.mxu0 0.0
    %528 = vmatprep.mubr.f32.mxu0 0.0
    %v529 = vand.u32 %v54, 4294901760
    %530 = vmatmul.mubr.f32.gmra.mrb[0].mxu0 %v529
    %v531 = vpop.f32.mrb[0].mxu0
    %v532 = vadd.f32 %v434, %v531
    %v533 = vpop.f32.mrb[0].mxu0
    %534 = vmatprep.mubr.f32.mxu0 0.0
    %v535 = vand.u32 %v57, 4294901760
    %536 = vmatmul.mubr.f32.gmra.mrb[0].mxu0 %v535
    %v537 = vpop.f32.mrb[0].mxu0
    %v538 = vadd.f32 %v442, %v537
    %v539 = vpop.f32.mrb[0].mxu0
    %540 = vmatprep.mubr.f32.mxu0 0.0
    %v541 = vand.u32 %v60, 4294901760
    %542 = vmatmul.mubr.f32.gmra.mrb[0].mxu0 %v541
    %v543 = vpop.f32.mrb[0].mxu0
    %v544 = vadd.f32 %v450, %v543
    %v545 = vpop.f32.mrb[0].mxu0
    %546 = vmatprep.mubr.f32.mxu0 0.0
    %v547 = vand.u32 %v63, 4294901760
    %548 = vmatmul.mubr.f32.gmra.mrb[0].mxu0 %v547
    %v549 = vpop.f32.mrb[0].mxu0
    %v550 = vadd.f32 %v458, %v549
    %v551 = vpop.f32.mrb[0].mxu0
    %552 = vdwg.mxu0
    %553 = vmatprep.subr.mxu0 0.0
    %v554 = vand.u32 %v66, 4294901760
    %555 = vmatpush1.xpose.msra.mxu0 %v554
    %556 = vmatprep.subr.mxu0 0.0
    %557 = vmatpush1.xpose.msra.mxu0 0.0
    %558 = vmatprep.subr.mxu0 0.0
    %559 = vmatpush1.xpose.msra.mxu0 0.0
    %560 = vmatprep.subr.mxu0 0.0
    %561 = vmatpush1.xpose.msra.mxu0 0.0
    %562 = vmatprep.subr.mxu0 0.0
    %563 = vmatpush1.xpose.msra.mxu0 0.0
    %564 = vmatprep.subr.mxu0 0.0
    %565 = vmatpush1.xpose.msra.mxu0 0.0
    %566 = vmatprep.subr.mxu0 0.0
    %567 = vmatpush1.xpose.msra.mxu0 0.0
    %568 = vmatprep.subr.mxu0 0.0
    %569 = vmatpush1.xpose.msra.mxu0 0.0
    %570 = vmatprep.subr.mxu0 0.0
    %571 = vmatpush1.xpose.msra.mxu0 0.0
    %572 = vmatprep.subr.mxu0 0.0
    %573 = vmatpush1.xpose.msra.mxu0 0.0
    %574 = vmatprep.subr.mxu0 0.0
    %575 = vmatpush1.xpose.msra.mxu0 0.0
    %576 = vmatprep.subr.mxu0 0.0
    %577 = vmatpush1.xpose.msra.mxu0 0.0
    %578 = vmatprep.subr.mxu0 0.0
    %579 = vmatpush1.xpose.msra.mxu0 0.0
    %580 = vmatprep.subr.mxu0 0.0
    %581 = vmatpush1.xpose.msra.mxu0 0.0
    %582 = vmatprep.subr.mxu0 0.0
    %583 = vmatpush1.xpose.msra.mxu0 0.0
    %584 = vmatprep.subr.mxu0 0.0
    %585 = vmatpush1.xpose.msra.mxu0 0.0
    %586 = vmatprep.subr.mxu0 0.0
    %587 = vmatpush1.xpose.msra.mxu0 0.0
    %588 = vmatprep.subr.mxu0 0.0
    %589 = vmatpush1.xpose.msra.mxu0 0.0
    %590 = vmatprep.subr.mxu0 0.0
    %591 = vmatpush1.xpose.msra.mxu0 0.0
    %592 = vmatprep.subr.mxu0 0.0
    %593 = vmatpush1.xpose.msra.mxu0 0.0
    %594 = vmatprep.subr.mxu0 0.0
    %595 = vmatpush1.xpose.msra.mxu0 0.0
    %596 = vmatprep.subr.mxu0 0.0
    %597 = vmatpush1.xpose.msra.mxu0 0.0
    %598 = vmatprep.subr.mxu0 0.0
    %599 = vmatpush1.xpose.msra.mxu0 0.0
    %600 = vmatprep.subr.mxu0 0.0
    %601 = vmatpush1.xpose.msra.mxu0 0.0
    %602 = vmatprep.subr.mxu0 0.0
    %603 = vmatpush1.xpose.msra.mxu0 0.0
    %604 = vmatprep.subr.mxu0 0.0
    %605 = vmatpush1.xpose.msra.mxu0 0.0
    %606 = vmatprep.subr.mxu0 0.0
    %607 = vmatpush1.xpose.msra.mxu0 0.0
    %608 = vmatprep.subr.mxu0 0.0
    %609 = vmatpush1.xpose.msra.mxu0 0.0
    %610 = vmatprep.subr.mxu0 0.0
    %611 = vmatpush1.xpose.msra.mxu0 0.0
    %612 = vmatprep.subr.mxu0 0.0
    %613 = vmatpush1.xpose.msra.mxu0 0.0
    %614 = vmatprep.subr.mxu0 0.0
    %615 = vmatpush1.xpose.msra.mxu0 0.0
    %616 = vmatprep.subr.mxu0 0.0
    %617 = vmatpush1.xpose.msra.mxu0 0.0
    %618 = vmatprep.mubr.f32.mxu0 0.0
    %v619 = vand.u32 %v54, 4294901760
    %620 = vmatmul.mubr.f32.gmra.mrb[0].mxu0 %v619
    %v621 = vpop.f32.mrb[0].mxu0
    %v622 = vadd.f32 %v532, %v621
    %v623 = vpop.f32.mrb[0].mxu0
    %624 = vmatprep.mubr.f32.mxu0 0.0
    %v625 = vand.u32 %v57, 4294901760
    %626 = vmatmul.mubr.f32.gmra.mrb[0].mxu0 %v625
    %v627 = vpop.f32.mrb[0].mxu0
    %v628 = vadd.f32 %v538, %v627
    %v629 = vpop.f32.mrb[0].mxu0
    %630 = vmatprep.mubr.f32.mxu0 0.0
    %v631 = vand.u32 %v60, 4294901760
    %632 = vmatmul.mubr.f32.gmra.mrb[0].mxu0 %v631
    %v633 = vpop.f32.mrb[0].mxu0
    %v634 = vadd.f32 %v544, %v633
    %v635 = vpop.f32.mrb[0].mxu0
    %636 = vmatprep.mubr.f32.mxu0 0.0
    %v637 = vand.u32 %v63, 4294901760
    %638 = vmatmul.mubr.f32.gmra.mrb[0].mxu0 %v637
    %v639 = vpop.f32.mrb[0].mxu0
    %v640 = vadd.f32 %v550, %v639
    %v641 = vpop.f32.mrb[0].mxu0
    %642 = vdwg.mxu0
    %v643 = vmax.f32 %v622, 0.0
    %v644 = vmax.f32 %v628, 0.0
    %v645 = vmax.f32 %v634, 0.0
    %v646 = vmax.f32 %v640, 0.0
    %v647 = vld [vmem:[%s3] sm:$0x1]
    %v648 = vld [vmem:[#allocation2] sm:$0x1]
    %650 = vset.pattern.permute.xlu0 0
    %651 = vperm.xlu0 %650, %v648
    %v652 = vpop.permute.xlu0 %651
    %v654 = vlaneseq
    %v655 = vshrl.u32 %v654, 7
    %v656 = vsub.s32 0, %v655
    %v657 = vrot.slane %v652, %v656
    %v659 = vsel %vm52, %v647, 0
    %661 = vmatprep.subr.mxu0 0.0
    %v662 = vand.u32 %v643, 4294901760
    %663 = vmatpush1.msra.mxu0 %v662
    %664 = vmatprep.subr.mxu0 0.0
    %v665 = vand.u32 %v644, 4294901760
    %666 = vmatpush1.msra.mxu0 %v665
    %667 = vmatprep.subr.mxu0 0.0
    %v668 = vand.u32 %v645, 4294901760
    %669 = vmatpush1.msra.mxu0 %v668
    %670 = vmatprep.subr.mxu0 0.0
    %v671 = vand.u32 %v646, 4294901760
    %672 = vmatpush1.msra.mxu0 %v671
    %673 = vmatprep.subr.mxu0 0.0
    %674 = vmatpush1.msra.mxu0 0.0
    %675 = vmatprep.subr.mxu0 0.0
    %676 = vmatpush1.msra.mxu0 0.0
    %677 = vmatprep.subr.mxu0 0.0
    %678 = vmatpush1.msra.mxu0 0.0
    %679 = vmatprep.subr.mxu0 0.0
    %680 = vmatpush1.msra.mxu0 0.0
    %681 = vmatprep.subr.mxu0 0.0
    %682 = vmatpush1.msra.mxu0 0.0
    %683 = vmatprep.subr.mxu0 0.0
    %684 = vmatpush1.msra.mxu0 0.0
    %685 = vmatprep.subr.mxu0 0.0
    %686 = vmatpush1.msra.mxu0 0.0
    %687 = vmatprep.subr.mxu0 0.0
    %688 = vmatpush1.msra.mxu0 0.0
    %689 = vmatprep.subr.mxu0 0.0
    %690 = vmatpush1.msra.mxu0 0.0
    %691 = vmatprep.subr.mxu0 0.0
    %692 = vmatpush1.msra.mxu0 0.0
    %693 = vmatprep.subr.mxu0 0.0
    %694 = vmatpush1.msra.mxu0 0.0
    %695 = vmatprep.subr.mxu0 0.0
    %696 = vmatpush1.msra.mxu0 0.0
    %697 = vmatprep.subr.mxu0 0.0
    %698 = vmatpush1.msra.mxu0 0.0
    %699 = vmatprep.subr.mxu0 0.0
    %700 = vmatpush1.msra.mxu0 0.0
    %701 = vmatprep.subr.mxu0 0.0
    %702 = vmatpush1.msra.mxu0 0.0
    %703 = vmatprep.subr.mxu0 0.0
    %704 = vmatpush1.msra.mxu0 0.0
    %705 = vmatprep.subr.mxu0 0.0
    %706 = vmatpush1.msra.mxu0 0.0
    %707 = vmatprep.subr.mxu0 0.0
    %708 = vmatpush1.msra.mxu0 0.0
    %709 = vmatprep.subr.mxu0 0.0
    %710 = vmatpush1.msra.mxu0 0.0
    %711 = vmatprep.subr.mxu0 0.0
    %712 = vmatpush1.msra.mxu0 0.0
    %713 = vmatprep.subr.mxu0 0.0
    %714 = vmatpush1.msra.mxu0 0.0
    %715 = vmatprep.subr.mxu0 0.0
    %716 = vmatpush1.msra.mxu0 0.0
    %717 = vmatprep.subr.mxu0 0.0
    %718 = vmatpush1.msra.mxu0 0.0
    %719 = vmatprep.subr.mxu0 0.0
    %720 = vmatpush1.msra.mxu0 0.0
    %721 = vmatprep.subr.mxu0 0.0
    %722 = vmatpush1.msra.mxu0 0.0
    %723 = vmatprep.subr.mxu0 0.0
    %724 = vmatpush1.msra.mxu0 0.0
    %725 = vmatprep.subr.mxu0 0.0
    %726 = vmatpush1.msra.mxu0 0.0
    %727 = vmatprep.subr.mxu0 0.0
    %728 = vmatpush1.msra.mxu0 0.0
    %729 = vmatprep.mubr.f32.mxu0 0.0
    %v730 = vand.u32 %v659, 4294901760
    %v731 = vsub.f32 %v659, %v730
    %v732 = vand.u32 %v731, 4294901760
    %v733 = vsub.f32 %v731, %v732
    %v734 = vand.u32 %v733, 4294901760
    %735 = vmatmul.mubr.f32.gmra.mrb[0].mxu0 %v734
    %v736 = vpop.f32.mrb[0].mxu0
    %v737 = vadd.f32 %v657, %v736
    %v738 = vpop.f32.mrb[0].mxu0
    %739 = vdwg.mxu0
    %740 = vmatprep.subr.mxu0 0.0
    %v741 = vand.u32 %v643, 4294901760
    %v742 = vsub.f32 %v643, %v741
    %v743 = vand.u32 %v742, 4294901760
    %v744 = vsub.f32 %v742, %v743
    %v745 = vand.u32 %v744, 4294901760
    %746 = vmatpush1.msra.mxu0 %v745
    %747 = vmatprep.subr.mxu0 0.0
    %v748 = vand.u32 %v644, 4294901760
    %v749 = vsub.f32 %v644, %v748
    %v750 = vand.u32 %v749, 4294901760
    %v751 = vsub.f32 %v749, %v750
    %v752 = vand.u32 %v751, 4294901760
    %753 = vmatpush1.msra.mxu0 %v752
    %754 = vmatprep.subr.mxu0 0.0
    %v755 = vand.u32 %v645, 4294901760
    %v756 = vsub.f32 %v645, %v755
    %v757 = vand.u32 %v756, 4294901760
    %v758 = vsub.f32 %v756, %v757
    %v759 = vand.u32 %v758, 4294901760
    %760 = vmatpush1.msra.mxu0 %v759
    %761 = vmatprep.subr.mxu0 0.0
    %v762 = vand.u32 %v646, 4294901760
    %v763 = vsub.f32 %v646, %v762
    %v764 = vand.u32 %v763, 4294901760
    %v765 = vsub.f32 %v763, %v764
    %v766 = vand.u32 %v765, 4294901760
    %767 = vmatpush1.msra.mxu0 %v766
    %768 = vmatprep.subr.mxu0 0.0
    %769 = vmatpush1.msra.mxu0 0.0
    %770 = vmatprep.subr.mxu0 0.0
    %771 = vmatpush1.msra.mxu0 0.0
    %772 = vmatprep.subr.mxu0 0.0
    %773 = vmatpush1.msra.mxu0 0.0
    %774 = vmatprep.subr.mxu0 0.0
    %775 = vmatpush1.msra.mxu0 0.0
    %776 = vmatprep.subr.mxu0 0.0
    %777 = vmatpush1.msra.mxu0 0.0
    %778 = vmatprep.subr.mxu0 0.0
    %779 = vmatpush1.msra.mxu0 0.0
    %780 = vmatprep.subr.mxu0 0.0
    %781 = vmatpush1.msra.mxu0 0.0
    %782 = vmatprep.subr.mxu0 0.0
    %783 = vmatpush1.msra.mxu0 0.0
    %784 = vmatprep.subr.mxu0 0.0
    %785 = vmatpush1.msra.mxu0 0.0
    %786 = vmatprep.subr.mxu0 0.0
    %787 = vmatpush1.msra.mxu0 0.0
    %788 = vmatprep.subr.mxu0 0.0
    %789 = vmatpush1.msra.mxu0 0.0
    %790 = vmatprep.subr.mxu0 0.0
    %791 = vmatpush1.msra.mxu0 0.0
    %792 = vmatprep.subr.mxu0 0.0
    %793 = vmatpush1.msra.mxu0 0.0
    %794 = vmatprep.subr.mxu0 0.0
    %795 = vmatpush1.msra.mxu0 0.0
    %796 = vmatprep.subr.mxu0 0.0
    %797 = vmatpush1.msra.mxu0 0.0
    %798 = vmatprep.subr.mxu0 0.0
    %799 = vmatpush1.msra.mxu0 0.0
    %800 = vmatprep.subr.mxu0 0.0
    %801 = vmatpush1.msra.mxu0 0.0
    %802 = vmatprep.subr.mxu0 0.0
    %803 = vmatpush1.msra.mxu0 0.0
    %804 = vmatprep.subr.mxu0 0.0
    %805 = vmatpush1.msra.mxu0 0.0
    %806 = vmatprep.subr.mxu0 0.0
    %807 = vmatpush1.msra.mxu0 0.0
    %808 = vmatprep.subr.mxu0 0.0
    %809 = vmatpush1.msra.mxu0 0.0
    %810 = vmatprep.subr.mxu0 0.0
    %811 = vmatpush1.msra.mxu0 0.0
    %812 = vmatprep.subr.mxu0 0.0
    %813 = vmatpush1.msra.mxu0 0.0
    %814 = vmatprep.subr.mxu0 0.0
    %815 = vmatpush1.msra.mxu0 0.0
    %816 = vmatprep.subr.mxu0 0.0
    %817 = vmatpush1.msra.mxu0 0.0
    %818 = vmatprep.subr.mxu0 0.0
    %819 = vmatpush1.msra.mxu0 0.0
    %820 = vmatprep.subr.mxu0 0.0
    %821 = vmatpush1.msra.mxu0 0.0
    %822 = vmatprep.subr.mxu0 0.0
    %823 = vmatpush1.msra.mxu0 0.0
    %824 = vmatprep.mubr.f32.mxu0 0.0
    %v825 = vand.u32 %v659, 4294901760
    %826 = vmatmul.mubr.f32.gmra.mrb[0].mxu0 %v825
    %v827 = vpop.f32.mrb[0].mxu0
    %v828 = vadd.f32 %v737, %v827
    %v829 = vpop.f32.mrb[0].mxu0
    %830 = vdwg.mxu0
    %831 = vmatprep.subr.mxu0 0.0
    %v832 = vand.u32 %v643, 4294901760
    %v833 = vsub.f32 %v643, %v832
    %834 = vmatpush1.msra.mxu0 %v833
    %835 = vmatprep.subr.mxu0 0.0
    %v836 = vand.u32 %v644, 4294901760
    %v837 = vsub.f32 %v644, %v836
    %838 = vmatpush1.msra.mxu0 %v837
    %839 = vmatprep.subr.mxu0 0.0
    %v840 = vand.u32 %v645, 4294901760
    %v841 = vsub.f32 %v645, %v840
    %842 = vmatpush1.msra.mxu0 %v841
    %843 = vmatprep.subr.mxu0 0.0
    %v844 = vand.u32 %v646, 4294901760
    %v845 = vsub.f32 %v646, %v844
    %846 = vmatpush1.msra.mxu0 %v845
    %847 = vmatprep.subr.mxu0 0.0
    %848 = vmatpush1.msra.mxu0 0.0
    %849 = vmatprep.subr.mxu0 0.0
    %850 = vmatpush1.msra.mxu0 0.0
    %851 = vmatprep.subr.mxu0 0.0
    %852 = vmatpush1.msra.mxu0 0.0
    %853 = vmatprep.subr.mxu0 0.0
    %854 = vmatpush1.msra.mxu0 0.0
    %855 = vmatprep.subr.mxu0 0.0
    %856 = vmatpush1.msra.mxu0 0.0
    %857 = vmatprep.subr.mxu0 0.0
    %858 = vmatpush1.msra.mxu0 0.0
    %859 = vmatprep.subr.mxu0 0.0
    %860 = vmatpush1.msra.mxu0 0.0
    %861 = vmatprep.subr.mxu0 0.0
    %862 = vmatpush1.msra.mxu0 0.0
    %863 = vmatprep.subr.mxu0 0.0
    %864 = vmatpush1.msra.mxu0 0.0
    %865 = vmatprep.subr.mxu0 0.0
    %866 = vmatpush1.msra.mxu0 0.0
    %867 = vmatprep.subr.mxu0 0.0
    %868 = vmatpush1.msra.mxu0 0.0
    %869 = vmatprep.subr.mxu0 0.0
    %870 = vmatpush1.msra.mxu0 0.0
    %871 = vmatprep.subr.mxu0 0.0
    %872 = vmatpush1.msra.mxu0 0.0
    %873 = vmatprep.subr.mxu0 0.0
    %874 = vmatpush1.msra.mxu0 0.0
    %875 = vmatprep.subr.mxu0 0.0
    %876 = vmatpush1.msra.mxu0 0.0
    %877 = vmatprep.subr.mxu0 0.0
    %878 = vmatpush1.msra.mxu0 0.0
    %879 = vmatprep.subr.mxu0 0.0
    %880 = vmatpush1.msra.mxu0 0.0
    %881 = vmatprep.subr.mxu0 0.0
    %882 = vmatpush1.msra.mxu0 0.0
    %883 = vmatprep.subr.mxu0 0.0
    %884 = vmatpush1.msra.mxu0 0.0
    %885 = vmatprep.subr.mxu0 0.0
    %886 = vmatpush1.msra.mxu0 0.0
    %887 = vmatprep.subr.mxu0 0.0
    %888 = vmatpush1.msra.mxu0 0.0
    %889 = vmatprep.subr.mxu0 0.0
    %890 = vmatpush1.msra.mxu0 0.0
    %891 = vmatprep.subr.mxu0 0.0
    %892 = vmatpush1.msra.mxu0 0.0
    %893 = vmatprep.subr.mxu0 0.0
    %894 = vmatpush1.msra.mxu0 0.0
    %895 = vmatprep.subr.mxu0 0.0
    %896 = vmatpush1.msra.mxu0 0.0
    %897 = vmatprep.subr.mxu0 0.0
    %898 = vmatpush1.msra.mxu0 0.0
    %899 = vmatprep.subr.mxu0 0.0
    %900 = vmatpush1.msra.mxu0 0.0
    %901 = vmatprep.subr.mxu0 0.0
    %902 = vmatpush1.msra.mxu0 0.0
    %903 = vmatprep.mubr.f32.mxu0 0.0
    %v904 = vand.u32 %v659, 4294901760
    %v905 = vsub.f32 %v659, %v904
    %906 = vmatmul.mubr.f32.gmra.mrb[0].mxu0 %v905
    %v907 = vpop.f32.mrb[0].mxu0
    %v908 = vadd.f32 %v828, %v907
    %v909 = vpop.f32.mrb[0].mxu0
    %910 = vdwg.mxu0
    %911 = vmatprep.subr.mxu0 0.0
    %v912 = vand.u32 %v643, 4294901760
    %913 = vmatpush1.msra.mxu0 %v912
    %914 = vmatprep.subr.mxu0 0.0
    %v915 = vand.u32 %v644, 4294901760
    %916 = vmatpush1.msra.mxu0 %v915
    %917 = vmatprep.subr.mxu0 0.0
    %v918 = vand.u32 %v645, 4294901760
    %919 = vmatpush1.msra.mxu0 %v918
    %920 = vmatprep.subr.mxu0 0.0
    %v921 = vand.u32 %v646, 4294901760
    %922 = vmatpush1.msra.mxu0 %v921
    %923 = vmatprep.subr.mxu0 0.0
    %924 = vmatpush1.msra.mxu0 0.0
    %925 = vmatprep.subr.mxu0 0.0
    %926 = vmatpush1.msra.mxu0 0.0
    %927 = vmatprep.subr.mxu0 0.0
    %928 = vmatpush1.msra.mxu0 0.0
    %929 = vmatprep.subr.mxu0 0.0
    %930 = vmatpush1.msra.mxu0 0.0
    %931 = vmatprep.subr.mxu0 0.0
    %932 = vmatpush1.msra.mxu0 0.0
    %933 = vmatprep.subr.mxu0 0.0
    %934 = vmatpush1.msra.mxu0 0.0
    %935 = vmatprep.subr.mxu0 0.0
    %936 = vmatpush1.msra.mxu0 0.0
    %937 = vmatprep.subr.mxu0 0.0
    %938 = vmatpush1.msra.mxu0 0.0
    %939 = vmatprep.subr.mxu0 0.0
    %940 = vmatpush1.msra.mxu0 0.0
    %941 = vmatprep.subr.mxu0 0.0
    %942 = vmatpush1.msra.mxu0 0.0
    %943 = vmatprep.subr.mxu0 0.0
    %944 = vmatpush1.msra.mxu0 0.0
    %945 = vmatprep.subr.mxu0 0.0
    %946 = vmatpush1.msra.mxu0 0.0
    %947 = vmatprep.subr.mxu0 0.0
    %948 = vmatpush1.msra.mxu0 0.0
    %949 = vmatprep.subr.mxu0 0.0
    %950 = vmatpush1.msra.mxu0 0.0
    %951 = vmatprep.subr.mxu0 0.0
    %952 = vmatpush1.msra.mxu0 0.0
    %953 = vmatprep.subr.mxu0 0.0
    %954 = vmatpush1.msra.mxu0 0.0
    %955 = vmatprep.subr.mxu0 0.0
    %956 = vmatpush1.msra.mxu0 0.0
    %957 = vmatprep.subr.mxu0 0.0
    %958 = vmatpush1.msra.mxu0 0.0
    %959 = vmatprep.subr.mxu0 0.0
    %960 = vmatpush1.msra.mxu0 0.0
    %961 = vmatprep.subr.mxu0 0.0
    %962 = vmatpush1.msra.mxu0 0.0
    %963 = vmatprep.subr.mxu0 0.0
    %964 = vmatpush1.msra.mxu0 0.0
    %965 = vmatprep.subr.mxu0 0.0
    %966 = vmatpush1.msra.mxu0 0.0
    %967 = vmatprep.subr.mxu0 0.0
    %968 = vmatpush1.msra.mxu0 0.0
    %969 = vmatprep.subr.mxu0 0.0
    %970 = vmatpush1.msra.mxu0 0.0
    %971 = vmatprep.subr.mxu0 0.0
    %972 = vmatpush1.msra.mxu0 0.0
    %973 = vmatprep.subr.mxu0 0.0
    %974 = vmatpush1.msra.mxu0 0.0
    %975 = vmatprep.subr.mxu0 0.0
    %976 = vmatpush1.msra.mxu0 0.0
    %977 = vmatprep.subr.mxu0 0.0
    %978 = vmatpush1.msra.mxu0 0.0
    %979 = vmatprep.mubr.f32.mxu0 0.0
    %v980 = vand.u32 %v659, 4294901760
    %v981 = vsub.f32 %v659, %v980
    %v982 = vand.u32 %v981, 4294901760
    %983 = vmatmul.mubr.f32.gmra.mrb[0].mxu0 %v982
    %v984 = vpop.f32.mrb[0].mxu0
    %v985 = vadd.f32 %v908, %v984
    %v986 = vpop.f32.mrb[0].mxu0
    %987 = vdwg.mxu0
    %988 = vmatprep.subr.mxu0 0.0
    %v989 = vand.u32 %v643, 4294901760
    %v990 = vsub.f32 %v643, %v989
    %v991 = vand.u32 %v990, 4294901760
    %992 = vmatpush1.msra.mxu0 %v991
    %993 = vmatprep.subr.mxu0 0.0
    %v994 = vand.u32 %v644, 4294901760
    %v995 = vsub.f32 %v644, %v994
    %v996 = vand.u32 %v995, 4294901760
    %997 = vmatpush1.msra.mxu0 %v996
    %998 = vmatprep.subr.mxu0 0.0
    %v999 = vand.u32 %v645, 4294901760
    %v1000 = vsub.f32 %v645, %v999
    %v1001 = vand.u32 %v1000, 4294901760
    %1002 = vmatpush1.msra.mxu0 %v1001
    %1003 = vmatprep.subr.mxu0 0.0
    %v1004 = vand.u32 %v646, 4294901760
    %v1005 = vsub.f32 %v646, %v1004
    %v1006 = vand.u32 %v1005, 4294901760
    %1007 = vmatpush1.msra.mxu0 %v1006
    %1008 = vmatprep.subr.mxu0 0.0
    %1009 = vmatpush1.msra.mxu0 0.0
    %1010 = vmatprep.subr.mxu0 0.0
    %1011 = vmatpush1.msra.mxu0 0.0
    %1012 = vmatprep.subr.mxu0 0.0
    %1013 = vmatpush1.msra.mxu0 0.0
    %1014 = vmatprep.subr.mxu0 0.0
    %1015 = vmatpush1.msra.mxu0 0.0
    %1016 = vmatprep.subr.mxu0 0.0
    %1017 = vmatpush1.msra.mxu0 0.0
    %1018 = vmatprep.subr.mxu0 0.0
    %1019 = vmatpush1.msra.mxu0 0.0
    %1020 = vmatprep.subr.mxu0 0.0
    %1021 = vmatpush1.msra.mxu0 0.0
    %1022 = vmatprep.subr.mxu0 0.0
    %1023 = vmatpush1.msra.mxu0 0.0
    %1024 = vmatprep.subr.mxu0 0.0
    %1025 = vmatpush1.msra.mxu0 0.0
    %1026 = vmatprep.subr.mxu0 0.0
    %1027 = vmatpush1.msra.mxu0 0.0
    %1028 = vmatprep.subr.mxu0 0.0
    %1029 = vmatpush1.msra.mxu0 0.0
    %1030 = vmatprep.subr.mxu0 0.0
    %1031 = vmatpush1.msra.mxu0 0.0
    %1032 = vmatprep.subr.mxu0 0.0
    %1033 = vmatpush1.msra.mxu0 0.0
    %1034 = vmatprep.subr.mxu0 0.0
    %1035 = vmatpush1.msra.mxu0 0.0
    %1036 = vmatprep.subr.mxu0 0.0
    %1037 = vmatpush1.msra.mxu0 0.0
    %1038 = vmatprep.subr.mxu0 0.0
    %1039 = vmatpush1.msra.mxu0 0.0
    %1040 = vmatprep.subr.mxu0 0.0
    %1041 = vmatpush1.msra.mxu0 0.0
    %1042 = vmatprep.subr.mxu0 0.0
    %1043 = vmatpush1.msra.mxu0 0.0
    %1044 = vmatprep.subr.mxu0 0.0
    %1045 = vmatpush1.msra.mxu0 0.0
    %1046 = vmatprep.subr.mxu0 0.0
    %1047 = vmatpush1.msra.mxu0 0.0
    %1048 = vmatprep.subr.mxu0 0.0
    %1049 = vmatpush1.msra.mxu0 0.0
    %1050 = vmatprep.subr.mxu0 0.0
    %1051 = vmatpush1.msra.mxu0 0.0
    %1052 = vmatprep.subr.mxu0 0.0
    %1053 = vmatpush1.msra.mxu0 0.0
    %1054 = vmatprep.subr.mxu0 0.0
    %1055 = vmatpush1.msra.mxu0 0.0
    %1056 = vmatprep.subr.mxu0 0.0
    %1057 = vmatpush1.msra.mxu0 0.0
    %1058 = vmatprep.subr.mxu0 0.0
    %1059 = vmatpush1.msra.mxu0 0.0
    %1060 = vmatprep.subr.mxu0 0.0
    %1061 = vmatpush1.msra.mxu0 0.0
    %1062 = vmatprep.subr.mxu0 0.0
    %1063 = vmatpush1.msra.mxu0 0.0
    %1064 = vmatprep.mubr.f32.mxu0 0.0
    %v1065 = vand.u32 %v659, 4294901760
    %1066 = vmatmul.mubr.f32.gmra.mrb[0].mxu0 %v1065
    %v1067 = vpop.f32.mrb[0].mxu0
    %v1068 = vadd.f32 %v985, %v1067
    %v1069 = vpop.f32.mrb[0].mxu0
    %1070 = vdwg.mxu0
    %1071 = vmatprep.subr.mxu0 0.0
    %v1072 = vand.u32 %v643, 4294901760
    %1073 = vmatpush1.msra.mxu0 %v1072
    %1074 = vmatprep.subr.mxu0 0.0
    %v1075 = vand.u32 %v644, 4294901760
    %1076 = vmatpush1.msra.mxu0 %v1075
    %1077 = vmatprep.subr.mxu0 0.0
    %v1078 = vand.u32 %v645, 4294901760
    %1079 = vmatpush1.msra.mxu0 %v1078
    %1080 = vmatprep.subr.mxu0 0.0
    %v1081 = vand.u32 %v646, 4294901760
    %1082 = vmatpush1.msra.mxu0 %v1081
    %1083 = vmatprep.subr.mxu0 0.0
    %1084 = vmatpush1.msra.mxu0 0.0
    %1085 = vmatprep.subr.mxu0 0.0
    %1086 = vmatpush1.msra.mxu0 0.0
    %1087 = vmatprep.subr.mxu0 0.0
    %1088 = vmatpush1.msra.mxu0 0.0
    %1089 = vmatprep.subr.mxu0 0.0
    %1090 = vmatpush1.msra.mxu0 0.0
    %1091 = vmatprep.subr.mxu0 0.0
    %1092 = vmatpush1.msra.mxu0 0.0
    %1093 = vmatprep.subr.mxu0 0.0
    %1094 = vmatpush1.msra.mxu0 0.0
    %1095 = vmatprep.subr.mxu0 0.0
    %1096 = vmatpush1.msra.mxu0 0.0
    %1097 = vmatprep.subr.mxu0 0.0
    %1098 = vmatpush1.msra.mxu0 0.0
    %1099 = vmatprep.subr.mxu0 0.0
    %1100 = vmatpush1.msra.mxu0 0.0
    %1101 = vmatprep.subr.mxu0 0.0
    %1102 = vmatpush1.msra.mxu0 0.0
    %1103 = vmatprep.subr.mxu0 0.0
    %1104 = vmatpush1.msra.mxu0 0.0
    %1105 = vmatprep.subr.mxu0 0.0
    %1106 = vmatpush1.msra.mxu0 0.0
    %1107 = vmatprep.subr.mxu0 0.0
    %1108 = vmatpush1.msra.mxu0 0.0
    %1109 = vmatprep.subr.mxu0 0.0
    %1110 = vmatpush1.msra.mxu0 0.0
    %1111 = vmatprep.subr.mxu0 0.0
    %1112 = vmatpush1.msra.mxu0 0.0
    %1113 = vmatprep.subr.mxu0 0.0
    %1114 = vmatpush1.msra.mxu0 0.0
    %1115 = vmatprep.subr.mxu0 0.0
    %1116 = vmatpush1.msra.mxu0 0.0
    %1117 = vmatprep.subr.mxu0 0.0
    %1118 = vmatpush1.msra.mxu0 0.0
    %1119 = vmatprep.subr.mxu0 0.0
    %1120 = vmatpush1.msra.mxu0 0.0
    %1121 = vmatprep.subr.mxu0 0.0
    %1122 = vmatpush1.msra.mxu0 0.0
    %1123 = vmatprep.subr.mxu0 0.0
    %1124 = vmatpush1.msra.mxu0 0.0
    %1125 = vmatprep.subr.mxu0 0.0
    %1126 = vmatpush1.msra.mxu0 0.0
    %1127 = vmatprep.subr.mxu0 0.0
    %1128 = vmatpush1.msra.mxu0 0.0
    %1129 = vmatprep.subr.mxu0 0.0
    %1130 = vmatpush1.msra.mxu0 0.0
    %1131 = vmatprep.subr.mxu0 0.0
    %1132 = vmatpush1.msra.mxu0 0.0
    %1133 = vmatprep.subr.mxu0 0.0
    %1134 = vmatpush1.msra.mxu0 0.0
    %1135 = vmatprep.subr.mxu0 0.0
    %1136 = vmatpush1.msra.mxu0 0.0
    %1137 = vmatprep.subr.mxu0 0.0
    %1138 = vmatpush1.msra.mxu0 0.0
    %1139 = vmatprep.mubr.f32.mxu0 0.0
    %v1140 = vand.u32 %v659, 4294901760
    %1141 = vmatmul.mubr.f32.gmra.mrb[0].mxu0 %v1140
    %v1142 = vpop.f32.mrb[0].mxu0
    %v1143 = vadd.f32 %v1068, %v1142
    %v1144 = vpop.f32.mrb[0].mxu0
    %1145 = vdwg.mxu0
    %v1146 = vmul.f32 %v1143, 1.442695
    %v1147 = vpow.pop %v1146
    %v1148 = vadd.f32 %v1147, 1.0
    %v1149 = vrcp.pop %v1148
    %v1150 = vmul.f32 1.0, %v1149
    %v1151 = vsub.f32 1.0, %v1150
    %vm1152 = vcmask 57344
    %1153 = vst.msk [vmem:[#allocation3] sm:$0x1] %vm1152, %v1151
    %1154 = vst.msk [vmem:[#allocation3 + $0x1] sm:$0x1] %vm1152, %v1150
    // Predicated region
    $region22: #{tpu_custom_call.1} parent=1 // pred_check
      _
    $region23: #{tpu_custom_call.1} parent=1 // pred_check_branch
      %1156 = sbr.rel (0) target = $region25
    $region24: #{tpu_custom_call.1} parent=1 // pred_region
      %s1158 = ssub.s32 32, 32
      %1159 = vsyncadd [#allocation4], %s1158
      %s1161 = sshll.u32 [#allocation3], 4
      %s1162 = int_to_ptr.vmem [resolvable:$true] %s1161
      %1164 = dma.vmem_to_hbm [thread:$0]  %s1162, 32, %s5, [#allocation4]
    $region25: #{tpu_custom_call.1} parent=1 // pred_fallthru
      _
    // Predicated region
    $region26: #{tpu_custom_call.1} parent=1 // pred_check
      _
    $region27: #{tpu_custom_call.1} parent=1 // pred_check_branch
      %1166 = sbr.rel (0) target = $region29
    $region28: #{tpu_custom_call.1} parent=1 // pred_region
      %1167 = dma.done [#allocation4], 32
    $region29: #{tpu_custom_call.1} parent=1 // pred_fallthru
      _
    %1168 = vsyncpa [#allocation4], 1

</llo_original>
